<compile_context>
chip_gen: v7x
topology: tpu7x:2x2x1
jax: 0.10.0
libtpu: 0.0.40
codegen_flags: <defaults>
</compile_context>

<pallas_src>
import functools

import jax
import jax.numpy as jnp
from jax.experimental import pallas as pl
from jax.experimental.pallas import tpu as pltpu


def _round_up(x, m):
    return (x + m - 1) // m * m


def _pick_chunk(T, cap=16):
    """Largest divisor of T that is <= cap (tokens processed per grid step)."""
    best = 1
    for d in range(1, min(T, cap) + 1):
        if T % d == 0:
            best = d
    return best


def lstm_chunk_kernel(xproj_ref, h0_ref, c0_ref, whh_ref, wfc_ref, bfc_ref,
                      logits_ref, h_out_ref, c_out_ref, hbuf_ref):
    """One grid step = T_INNER LSTM tokens + one chunk-level fc matmul.

    xproj_ref : (T_INNER, B, 4H) f32   precomputed emb@W_ih^T + b  (pipelined)
    h0/c0     : (B, H) f32             initial state (read only at chunk 0)
    whh_ref   : (H, 4H) bf16           W_hh^T (VMEM-resident, constant index)
    wfc_ref   : (H, Vp) bf16           fc weight^T, vocab padded to 128
    bfc_ref   : (1, Vp) f32            fc bias (padded)
    logits    : (T_INNER, B, Vp) f32   per-token logits for this chunk
    h_out/c_out: (B, H) f32            recurrent carry (constant out index_map)
    hbuf_ref  : (T_INNER, B, H) f32    VMEM scratch: chunk hidden states
    """
    s = pl.program_id(0)

    # Seed the carried state once; h_out/c_out blocks persist in VMEM across
    # grid steps (constant output index_map => accumulator pattern).
    @pl.when(s == 0)
    def _():
        h_out_ref[...] = h0_ref[...]
        c_out_ref[...] = c0_ref[...]

    t_inner, B, H = hbuf_ref.shape
    Vp = wfc_ref.shape[-1]

    whh = whh_ref[...]          # hoist the VMEM load out of the unrolled loop

    def step(t, carry):
        h, c = carry
        # gates = xproj[t] + h @ W_hh^T   (bf16 MXU, f32 accumulation)
        gates = xproj_ref[t] + jnp.dot(h.astype(jnp.bfloat16), whh,
                                       preferred_element_type=jnp.float32)
        # PyTorch LSTM gate order (i, f, g, o); H is a multiple of 128 so each
        # slice is a lane-aligned static view.
        i_g = jax.nn.sigmoid(gates[:, 0 * H:1 * H])
        f_g = jax.nn.sigmoid(gates[:, 1 * H:2 * H])
        g_g = jnp.tanh(gates[:, 2 * H:3 * H])
        o_g = jax.nn.sigmoid(gates[:, 3 * H:4 * H])
        # State math stays in f32 (v5e has no bf16 VPU/EUP path).
        c_new = f_g * c + i_g * g_g
        h_new = o_g * jnp.tanh(c_new)
        hbuf_ref[t] = h_new
        return h_new, c_new

    h_f, c_f = jax.lax.fori_loop(0, t_inner, step,
                                 (h_out_ref[...], c_out_ref[...]),
                                 unroll=True)
    h_out_ref[...] = h_f
    c_out_ref[...] = c_f

    # fc hoisted out of the token recurrence: one full-M matmul per chunk.
    h_all = hbuf_ref[...].astype(jnp.bfloat16).reshape(t_inner * B, H)
    logits = (jnp.dot(h_all, wfc_ref[...], preferred_element_type=jnp.float32)
              + bfc_ref[...])                                   # (T_INNER*B, Vp)
    logits_ref[...] = logits.reshape(t_inner, B, Vp)


@functools.partial(jax.jit, static_argnames=("t_inner",))
def _lstm_seq(x_ids_steps, h0, c0, xproj_table, w_hh_t, w_fc, b_fc, *, t_inner):
    T, B = x_ids_steps.shape
    H = h0.shape[-1]
    H4 = w_hh_t.shape[-1]
    Vp = w_fc.shape[-1]
    assert T % t_inner == 0

    # Pad batch so bf16 MXU operands fill (16, 128) packed tiles.  Padded rows
    # carry garbage state but never touch the valid rows (all per-row math).
    Bp = max(16, _round_up(B, 16))

    # Input projection hoisted out of the recurrence: one XLA gather from the
    # precomputed (V, 4H) table; the kernel streams (t_inner, Bp, 4H) blocks.
    xproj = xproj_table[x_ids_steps]                             # (T, B, 4H) f32
    if Bp != B:
        xproj = jnp.pad(xproj, ((0, 0), (0, Bp - B), (0, 0)))
        h0 = jnp.pad(h0, ((0, Bp - B), (0, 0)))
        c0 = jnp.pad(c0, ((0, Bp - B), (0, 0)))

    num_chunks = T // t_inner
    const2 = lambda s: (0, 0)

    logits_p, h_new, c_new = pl.pallas_call(
        lstm_chunk_kernel,
        grid=(num_chunks,),
        in_specs=[
            pl.BlockSpec((t_inner, Bp, H4), lambda s: (s, 0, 0)),  # xproj chunk
            pl.BlockSpec((Bp, H), const2),                         # h0
            pl.BlockSpec((Bp, H), const2),                         # c0
            pl.BlockSpec((H, H4), const2),                         # W_hh^T bf16
            pl.BlockSpec((H, Vp), const2),                         # fc W bf16
            pl.BlockSpec((1, Vp), const2),                         # fc bias
        ],
        out_specs=(
            pl.BlockSpec((t_inner, Bp, Vp), lambda s: (s, 0, 0)),  # logits chunk
            pl.BlockSpec((Bp, H), const2),                         # final h
            pl.BlockSpec((Bp, H), const2),                         # final c
        ),
        out_shape=(
            jax.ShapeDtypeStruct((T, Bp, Vp), jnp.float32),
            jax.ShapeDtypeStruct((Bp, H), jnp.float32),
            jax.ShapeDtypeStruct((Bp, H), jnp.float32),
        ),
        scratch_shapes=[pltpu.VMEM((t_inner, Bp, H), jnp.float32)],
        compiler_params=pltpu.CompilerParams(
            dimension_semantics=("arbitrary",)),                   # recurrence
    )(xproj, h0, c0, w_hh_t, w_fc, b_fc)

    return logits_p[:, :B], h_new[:B], c_new[:B]


def rnn_forward_steps(x_ids_steps, hidden, cell, params, max_chunk=16):
    """Run T LSTM+fc steps; one pallas_call, max_chunk tokens per grid step."""
    T = x_ids_steps.shape[0]
    V = params["vocab_size"]
    t_inner = _pick_chunk(T, max_chunk)
    logits_p, h_new, c_new = _lstm_seq(
        x_ids_steps, hidden[0], cell[0],
        params["xproj_table"], params["w_hh_t"], params["w_fc"], params["b_fc"],
        t_inner=t_inner)
    return logits_p[:, :, :V], h_new[None], c_new[None]


def rnn_forward(x_ids, hidden, cell, params):
    """Mirror of RNN.forward (single time step): returns (logits, hidden, cell)."""
    logits_all, h_new, c_new = rnn_forward_steps(
        x_ids[None, :], hidden, cell, params)
    return logits_all[0], h_new, c_new


def make_params(key, vocab_size, embed_dim, hidden):
    ks = jax.random.split(key, 7)
    k = 1.0 / float(hidden) ** 0.5
    vp = _round_up(vocab_size, 128)

    emb = jax.random.normal(ks[0], (vocab_size, embed_dim), jnp.float32)
    w_ih = jax.random.uniform(ks[1], (4 * hidden, embed_dim), jnp.float32, -k, k)
    w_hh = jax.random.uniform(ks[2], (4 * hidden, hidden), jnp.float32, -k, k)
    b_ih = jax.random.uniform(ks[3], (4 * hidden,), jnp.float32, -k, k)
    b_hh = jax.random.uniform(ks[4], (4 * hidden,), jnp.float32, -k, k)
    w_fc = jax.random.uniform(ks[5], (vocab_size, hidden), jnp.float32, -k, k)
    b_fc = jax.random.uniform(ks[6], (vocab_size,), jnp.float32, -k, k)

    # Input path folded out of the recurrence:
    #   xproj_table[v] = emb[v] @ W_ih^T + (b_ih + b_hh)        (V, 4H) f32
    xproj_table = emb @ w_ih.T + (b_ih + b_hh)[None, :]

    wfc_p = jnp.zeros((hidden, vp), jnp.float32).at[:, :vocab_size].set(w_fc.T)
    bfc_p = jnp.zeros((1, vp), jnp.float32).at[0, :vocab_size].set(b_fc)

    return {
        "vocab_size": vocab_size,
        "xproj_table": xproj_table,                 # (V, 4H)   f32
        "w_hh_t": w_hh.T.astype(jnp.bfloat16),      # (H, 4H)   bf16
        "w_fc": wfc_p.astype(jnp.bfloat16),         # (H, Vp)   bf16
        "b_fc": bfc_p,                              # (1, Vp)   f32
    }


def rnn_forward_steps_ref(x_ids_steps, hidden, cell, params):
    """Pure-JAX reference mirroring the kernel's bf16 matmul operands."""
    V = params["vocab_size"]
    xtab = params["xproj_table"]
    whh = params["w_hh_t"].astype(jnp.float32)
    wfc = params["w_fc"].astype(jnp.float32)
    bfc = params["b_fc"]
    H = hidden.shape[-1]

    def bf16(x):
        return x.astype(jnp.bfloat16).astype(jnp.float32)

    def step(carry, ids):
        h, c = carry
        gates = xtab[ids] + bf16(h) @ whh
        i_g = jax.nn.sigmoid(gates[:, 0 * H:1 * H])
        f_g = jax.nn.sigmoid(gates[:, 1 * H:2 * H])
        g_g = jnp.tanh(gates[:, 2 * H:3 * H])
        o_g = jax.nn.sigmoid(gates[:, 3 * H:4 * H])
        c_new = f_g * c + i_g * g_g
        h_new = o_g * jnp.tanh(c_new)
        logits = bf16(h_new) @ wfc + bfc
        return (h_new, c_new), logits

    (h_f, c_f), logits_all = jax.lax.scan(step, (hidden[0], cell[0]), x_ids_steps)
    return logits_all[:, :, :V], h_f[None], c_f[None]


if __name__ == "__main__":
    # Small, lane-aligned shapes consistent with the module
    # (module: E=256, H=512, vocab~O(80); scaled to 128/128/72 for the demo).
    VOCAB, EMBED, HIDDEN, BATCH, STEPS = 72, 128, 128, 8, 48

    key = jax.random.PRNGKey(0)
    k_par, k_x, k_seq = jax.random.split(key, 3)
    params = make_params(k_par, VOCAB, EMBED, HIDDEN)

    hidden0 = jnp.zeros((1, BATCH, HIDDEN), jnp.float32)   # init_hidden
    cell0 = jnp.zeros((1, BATCH, HIDDEN), jnp.float32)

    # 1) Single-step forward — exactly the PyTorch module's forward().
    x_ids = jax.random.randint(k_x, (BATCH,), 0, VOCAB, dtype=jnp.int32)
    logits, h1, c1 = rnn_forward(x_ids, hidden0, cell0, params)
    jax.block_until_ready((logits, h1, c1))
    assert logits.shape == (BATCH, VOCAB)
    assert h1.shape == (1, BATCH, HIDDEN) and c1.shape == (1, BATCH, HIDDEN)

    ref_l, ref_h, ref_c = rnn_forward_steps_ref(
        x_ids[None, :], hidden0, cell0, params)
    assert jnp.allclose(logits, ref_l[0], rtol=2e-2, atol=2e-2)
    assert jnp.allclose(h1, ref_h, rtol=2e-2, atol=2e-2)
    assert jnp.allclose(c1, ref_c, rtol=2e-2, atol=2e-2)

    # 2) Multi-step path: one pallas_call, 16 tokens per grid iteration,
    #    weights VMEM-resident, h/c carried across chunks in VMEM.
    x_seq = jax.random.randint(k_seq, (STEPS, BATCH), 0, VOCAB, dtype=jnp.int32)
    seq_logits, h_T, c_T = rnn_forward_steps(x_seq, hidden0, cell0, params)
    jax.block_until_ready((seq_logits, h_T, c_T))
    assert seq_logits.shape == (STEPS, BATCH, VOCAB)

    ref_sl, ref_hT, ref_cT = rnn_forward_steps_ref(x_seq, hidden0, cell0, params)
    assert jnp.allclose(seq_logits, ref_sl, rtol=2e-2, atol=2e-2)
    assert jnp.allclose(h_T, ref_hT, rtol=2e-2, atol=2e-2)
    assert jnp.allclose(c_T, ref_cT, rtol=2e-2, atol=2e-2)

    print("KERNEL_OK")
</pallas_src>

<mosaic_0001>
module attributes {stable_mosaic.version = 11 : i64} {
  func.func @lstm_chunk_kernel(%arg0: i32, %arg1: memref<1x16x512xf32, #tpu.memory_space<vmem>>, %arg2: memref<16x128xf32, #tpu.memory_space<vmem>>, %arg3: memref<16x128xf32, #tpu.memory_space<vmem>>, %arg4: memref<128x512xbf16, #tpu.memory_space<vmem>>, %arg5: memref<128x128xbf16, #tpu.memory_space<vmem>>, %arg6: memref<1x128xf32, #tpu.memory_space<vmem>>, %arg7: memref<1x16x128xf32, #tpu.memory_space<vmem>>, %arg8: memref<16x128xf32, #tpu.memory_space<vmem>>, %arg9: memref<16x128xf32, #tpu.memory_space<vmem>>, %arg10: memref<1x16x128xf32, #tpu.memory_space<vmem>>) attributes {dimension_semantics = [#tpu.dimension_semantics<arbitrary>], iteration_bounds = array<i64: 1>, scalar_prefetch = 0 : i64, scratch_operands = 1 : i64, tpu.core_type = #tpu.core_type<tc>, window_params = [{transform_indices = @transform_0, window_bounds = array<i64: 1, 16, 512>}, {pipeline_mode = #tpu.pipeline_mode<synchronous>, transform_indices = @transform_1, window_bounds = array<i64: 16, 128>}, {pipeline_mode = #tpu.pipeline_mode<synchronous>, transform_indices = @transform_2, window_bounds = array<i64: 16, 128>}, {pipeline_mode = #tpu.pipeline_mode<synchronous>, transform_indices = @transform_3, window_bounds = array<i64: 128, 512>}, {pipeline_mode = #tpu.pipeline_mode<synchronous>, transform_indices = @transform_4, window_bounds = array<i64: 128, 128>}, {pipeline_mode = #tpu.pipeline_mode<synchronous>, transform_indices = @transform_5, window_bounds = array<i64: 1, 128>}, {transform_indices = @transform_6, window_bounds = array<i64: 1, 16, 128>}, {pipeline_mode = #tpu.pipeline_mode<synchronous>, transform_indices = @transform_7, window_bounds = array<i64: 16, 128>}, {pipeline_mode = #tpu.pipeline_mode<synchronous>, transform_indices = @transform_8, window_bounds = array<i64: 16, 128>}]} {
    %c0_i32 = arith.constant 0 : i32
    %0 = arith.cmpi eq, %arg0, %c0_i32 : i32
    %1 = arith.extui %0 : i1 to i32
    %c0_i32_0 = arith.constant 0 : i32
    %2 = arith.cmpi ne, %1, %c0_i32_0 : i32
    scf.if %2 {
      %c0_29 = arith.constant 0 : index
      %c0_30 = arith.constant 0 : index
      %53 = vector.load %arg2[%c0_29, %c0_30] : memref<16x128xf32, #tpu.memory_space<vmem>>, vector<16x128xf32>
      %c0_31 = arith.constant 0 : index
      %c0_32 = arith.constant 0 : index
      %54 = vector.load %arg8[%c0_31, %c0_32] : memref<16x128xf32, #tpu.memory_space<vmem>>, vector<16x128xf32>
      tpu.vector_store %arg8[%c0_31, %c0_32], %53 {strides = array<i32>} : memref<16x128xf32, #tpu.memory_space<vmem>>, vector<16x128xf32>,
      %c0_33 = arith.constant 0 : index
      %c0_34 = arith.constant 0 : index
      %55 = vector.load %arg3[%c0_33, %c0_34] : memref<16x128xf32, #tpu.memory_space<vmem>>, vector<16x128xf32>
      %c0_35 = arith.constant 0 : index
      %c0_36 = arith.constant 0 : index
      %56 = vector.load %arg9[%c0_35, %c0_36] : memref<16x128xf32, #tpu.memory_space<vmem>>, vector<16x128xf32>
      tpu.vector_store %arg9[%c0_35, %c0_36], %55 {strides = array<i32>} : memref<16x128xf32, #tpu.memory_space<vmem>>, vector<16x128xf32>,
    } else {
    }
    %c0 = arith.constant 0 : index
    %c0_1 = arith.constant 0 : index
    %3 = vector.load %arg4[%c0, %c0_1] : memref<128x512xbf16, #tpu.memory_space<vmem>>, vector<128x512xbf16>
    %c0_2 = arith.constant 0 : index
    %c0_3 = arith.constant 0 : index
    %4 = vector.load %arg8[%c0_2, %c0_3] : memref<16x128xf32, #tpu.memory_space<vmem>>, vector<16x128xf32>
    %c0_4 = arith.constant 0 : index
    %c0_5 = arith.constant 0 : index
    %5 = vector.load %arg9[%c0_4, %c0_5] : memref<16x128xf32, #tpu.memory_space<vmem>>, vector<16x128xf32>
    %c0_i32_6 = arith.constant 0 : i32
    %6 = arith.index_cast %c0_i32_6 : i32 to index
    %c0_7 = arith.constant 0 : index
    %c0_8 = arith.constant 0 : index
    %7 = vector.load %arg1[%6, %c0_7, %c0_8] : memref<1x16x512xf32, #tpu.memory_space<vmem>>, vector<1x16x512xf32>
    %8 = vector.shape_cast %7 : vector<1x16x512xf32> to vector<16x512xf32>
    %9 = arith.truncf %4 : vector<16x128xf32> to vector<16x128xbf16>
    %cst = arith.constant dense<0.000000e+00> : vector<16x512xf32>
    %10 = tpu.matmul %9, %3, %cst {dimension_numbers = #tpu.dot_dimension_numbers<[1], [0], [0], [1], [0, 0, 1, 1], [], []>} : vector<16x128xbf16>, vector<128x512xbf16>, vector<16x512xf32> -> vector<16x512xf32>
    %11 = arith.addf %8, %10 : vector<16x512xf32>
    %12 = vector.extract_strided_slice %11 {offsets = [0, 0], sizes = [16, 128], strides = [1, 1]} : vector<16x512xf32> to vector<16x128xf32>
    %13 = arith.negf %12 : vector<16x128xf32>
    %14 = math.exp %13 : vector<16x128xf32>
    %cst_9 = arith.constant 1.000000e+00 : f32
    %15 = vector.broadcast %cst_9 : f32 to vector<16x128xf32>
    %16 = arith.addf %15, %14 : vector<16x128xf32>
    %17 = arith.divf %15, %16 : vector<16x128xf32>
    %18 = vector.extract_strided_slice %11 {offsets = [0, 128], sizes = [16, 128], strides = [1, 1]} : vector<16x512xf32> to vector<16x128xf32>
    %19 = arith.negf %18 : vector<16x128xf32>
    %20 = math.exp %19 : vector<16x128xf32>
    %cst_10 = arith.constant 1.000000e+00 : f32
    %21 = vector.broadcast %cst_10 : f32 to vector<16x128xf32>
    %22 = arith.addf %21, %20 : vector<16x128xf32>
    %23 = arith.divf %21, %22 : vector<16x128xf32>
    %24 = vector.extract_strided_slice %11 {offsets = [0, 256], sizes = [16, 128], strides = [1, 1]} : vector<16x512xf32> to vector<16x128xf32>
    %25 = math.tanh %24 : vector<16x128xf32>
    %26 = vector.extract_strided_slice %11 {offsets = [0, 384], sizes = [16, 128], strides = [1, 1]} : vector<16x512xf32> to vector<16x128xf32>
    %27 = arith.negf %26 : vector<16x128xf32>
    %28 = math.exp %27 : vector<16x128xf32>
    %cst_11 = arith.constant 1.000000e+00 : f32
    %29 = vector.broadcast %cst_11 : f32 to vector<16x128xf32>
    %30 = arith.addf %29, %28 : vector<16x128xf32>
    %31 = arith.divf %29, %30 : vector<16x128xf32>
    %32 = arith.mulf %23, %5 : vector<16x128xf32>
    %33 = arith.mulf %17, %25 : vector<16x128xf32>
    %34 = arith.addf %32, %33 : vector<16x128xf32>
    %35 = math.tanh %34 : vector<16x128xf32>
    %36 = arith.mulf %31, %35 : vector<16x128xf32>
    %37 = arith.index_cast %c0_i32_6 : i32 to index
    %c0_12 = arith.constant 0 : index
    %c0_13 = arith.constant 0 : index
    %38 = vector.load %arg10[%37, %c0_12, %c0_13] : memref<1x16x128xf32, #tpu.memory_space<vmem>>, vector<1x16x128xf32>
    %39 = vector.shape_cast %38 : vector<1x16x128xf32> to vector<16x128xf32>
    %40 = vector.shape_cast %36 : vector<16x128xf32> to vector<1x16x128xf32>
    tpu.vector_store %arg10[%37, %c0_12, %c0_13], %40 {strides = array<i32>} : memref<1x16x128xf32, #tpu.memory_space<vmem>>, vector<1x16x128xf32>,
    %c1_i32 = arith.constant 1 : i32
    %c0_14 = arith.constant 0 : index
    %c0_15 = arith.constant 0 : index
    %41 = vector.load %arg8[%c0_14, %c0_15] : memref<16x128xf32, #tpu.memory_space<vmem>>, vector<16x128xf32>
    tpu.vector_store %arg8[%c0_14, %c0_15], %36 {strides = array<i32>} : memref<16x128xf32, #tpu.memory_space<vmem>>, vector<16x128xf32>,
    %c0_16 = arith.constant 0 : index
    %c0_17 = arith.constant 0 : index
    %42 = vector.load %arg9[%c0_16, %c0_17] : memref<16x128xf32, #tpu.memory_space<vmem>>, vector<16x128xf32>
    tpu.vector_store %arg9[%c0_16, %c0_17], %34 {strides = array<i32>} : memref<16x128xf32, #tpu.memory_space<vmem>>, vector<16x128xf32>,
    %c0_18 = arith.constant 0 : index
    %c0_19 = arith.constant 0 : index
    %c0_20 = arith.constant 0 : index
    %43 = vector.load %arg10[%c0_18, %c0_19, %c0_20] : memref<1x16x128xf32, #tpu.memory_space<vmem>>, vector<1x16x128xf32>
    %44 = arith.truncf %43 : vector<1x16x128xf32> to vector<1x16x128xbf16>
    %45 = vector.shape_cast %44 : vector<1x16x128xbf16> to vector<16x128xbf16>
    %c0_21 = arith.constant 0 : index
    %c0_22 = arith.constant 0 : index
    %46 = vector.load %arg5[%c0_21, %c0_22] : memref<128x128xbf16, #tpu.memory_space<vmem>>, vector<128x128xbf16>
    %cst_23 = arith.constant dense<0.000000e+00> : vector<16x128xf32>
    %47 = tpu.matmul %45, %46, %cst_23 {dimension_numbers = #tpu.dot_dimension_numbers<[1], [0], [0], [1], [0, 0, 1, 1], [], []>} : vector<16x128xbf16>, vector<128x128xbf16>, vector<16x128xf32> -> vector<16x128xf32>
    %c0_24 = arith.constant 0 : index
    %c0_25 = arith.constant 0 : index
    %48 = vector.load %arg6[%c0_24, %c0_25] : memref<1x128xf32, #tpu.memory_space<vmem>>, vector<1x128xf32>
    %49 = vector.broadcast %48 : vector<1x128xf32> to vector<16x128xf32>
    %50 = arith.addf %47, %49 : vector<16x128xf32>
    %51 = vector.shape_cast %50 : vector<16x128xf32> to vector<1x16x128xf32>
    %c0_26 = arith.constant 0 : index
    %c0_27 = arith.constant 0 : index
    %c0_28 = arith.constant 0 : index
    %52 = vector.load %arg7[%c0_26, %c0_27, %c0_28] : memref<1x16x128xf32, #tpu.memory_space<vmem>>, vector<1x16x128xf32>
    tpu.vector_store %arg7[%c0_26, %c0_27, %c0_28], %51 {strides = array<i32>} : memref<1x16x128xf32, #tpu.memory_space<vmem>>, vector<1x16x128xf32>,
    return
  }
  func.func @transform_0(%arg0: i32) -> (i32, i32, i32) {
    %c0_i32 = arith.constant 0 : i32
    %c0_i32_0 = arith.constant 0 : i32
    %c0_i32_1 = arith.constant 0 : i32
    return %arg0, %c0_i32, %c0_i32_0 : i32, i32, i32
  }
  func.func @transform_1(%arg0: i32) -> (i32, i32) {
    %c0_i32 = arith.constant 0 : i32
    %c0_i32_0 = arith.constant 0 : i32
    %c0_i32_1 = arith.constant 0 : i32
    return %c0_i32, %c0_i32_0 : i32, i32
  }
  func.func @transform_2(%arg0: i32) -> (i32, i32) {
    %c0_i32 = arith.constant 0 : i32
    %c0_i32_0 = arith.constant 0 : i32
    %c0_i32_1 = arith.constant 0 : i32
    return %c0_i32, %c0_i32_0 : i32, i32
  }
  func.func @transform_3(%arg0: i32) -> (i32, i32) {
    %c0_i32 = arith.constant 0 : i32
    %c0_i32_0 = arith.constant 0 : i32
    %c0_i32_1 = arith.constant 0 : i32
    return %c0_i32, %c0_i32_0 : i32, i32
  }
  func.func @transform_4(%arg0: i32) -> (i32, i32) {
    %c0_i32 = arith.constant 0 : i32
    %c0_i32_0 = arith.constant 0 : i32
    %c0_i32_1 = arith.constant 0 : i32
    return %c0_i32, %c0_i32_0 : i32, i32
  }
  func.func @transform_5(%arg0: i32) -> (i32, i32) {
    %c0_i32 = arith.constant 0 : i32
    %c0_i32_0 = arith.constant 0 : i32
    %c0_i32_1 = arith.constant 0 : i32
    return %c0_i32, %c0_i32_0 : i32, i32
  }
  func.func @transform_6(%arg0: i32) -> (i32, i32, i32) {
    %c0_i32 = arith.constant 0 : i32
    %c0_i32_0 = arith.constant 0 : i32
    %c0_i32_1 = arith.constant 0 : i32
    return %arg0, %c0_i32, %c0_i32_0 : i32, i32, i32
  }
  func.func @transform_7(%arg0: i32) -> (i32, i32) {
    %c0_i32 = arith.constant 0 : i32
    %c0_i32_0 = arith.constant 0 : i32
    %c0_i32_1 = arith.constant 0 : i32
    return %c0_i32, %c0_i32_0 : i32, i32
  }
  func.func @transform_8(%arg0: i32) -> (i32, i32) {
    %c0_i32 = arith.constant 0 : i32
    %c0_i32_0 = arith.constant 0 : i32
    %c0_i32_1 = arith.constant 0 : i32
    return %c0_i32, %c0_i32_0 : i32, i32
  }
}

</mosaic_0001>

<llo_original>
// kernel: _lstm_seq.1
$region0: #{_lstm_seq.1}
  #allocation0 [shape = 'u32[]', space=smem, size = 0x4, offset = 0x4, fixed_abs, tag = 'smem constant byte address 0x4 - core index']
  #allocation1 [shape = 'u32[144,128]{1,0:T(1,128)}', space=vmem, size = 0x12000, scoped, tag = 'internal scratch']
  #allocation2 [shape = 'f32[1,16,128]{2,1,0:T(8,128)}', space=vmem, size = 0x2000, scoped, tag = 'scratch operand']
  %s0 = inlined_call_operand.vmem [shape: f32[1,16,512], index: 0, kind: input, shape index: {}]
  %s1 = inlined_call_operand.vmem [shape: f32[16,128], index: 1, kind: input, shape index: {}]
  %s2 = inlined_call_operand.vmem [shape: f32[16,128], index: 2, kind: input, shape index: {}]
  %s3 = inlined_call_operand.vmem [shape: bf16[128,512], index: 3, kind: input, shape index: {}]
  %s4 = inlined_call_operand.vmem [shape: bf16[128,128], index: 4, kind: input, shape index: {}]
  %s5 = inlined_call_operand.vmem [shape: f32[1,128], index: 5, kind: input, shape index: {}]
  %s6 = inlined_call_operand.vmem [shape: f32[1,16,128], index: 6, kind: output, shape index: {0}]
  %s7 = inlined_call_operand.vmem [shape: f32[16,128], index: 7, kind: output, shape index: {1}]
  %s8 = inlined_call_operand.vmem [shape: f32[16,128], index: 8, kind: output, shape index: {2}]
  %9 = xla_tuple %s6, %s7, %s8
  %s10 = sld [smem:[#allocation0]]
  $region54: #{_lstm_seq.1} parent=0
    _
  %s12 = ssub.s32 1, %s10
  %s13 = scalar_select 0, %s12, %s10
  // Predicated region
  $region2: #{_lstm_seq.1} parent=0 // pred_check
    _
  $region3: #{_lstm_seq.1} parent=0 // pred_check_branch
    %15 = sbr.rel (0) target = $region5
  $region4: #{_lstm_seq.1} parent=0 // pred_region
    _
  $region5: #{_lstm_seq.1} parent=0 // pred_fallthru
    _
  // Predicated region
  $region6: #{_lstm_seq.1} parent=0 // pred_check
    _
  $region7: #{_lstm_seq.1} parent=0 // pred_check_branch
    %17 = sbr.rel (0) target = $region9
  $region8: #{_lstm_seq.1} parent=0 // pred_region
    _
  $region9: #{_lstm_seq.1} parent=0 // pred_fallthru
    _
  // Predicated region
  $region10: #{_lstm_seq.1} parent=0 // pred_check
    _
  $region11: #{_lstm_seq.1} parent=0 // pred_check_branch
    %19 = sbr.rel (0) target = $region13
  $region12: #{_lstm_seq.1} parent=0 // pred_region
    _
  $region13: #{_lstm_seq.1} parent=0 // pred_fallthru
    _
  // Predicated region
  $region14: #{_lstm_seq.1} parent=0 // pred_check
    _
  $region15: #{_lstm_seq.1} parent=0 // pred_check_branch
    %21 = sbr.rel (0) target = $region17
  $region16: #{_lstm_seq.1} parent=0 // pred_region
    _
  $region17: #{_lstm_seq.1} parent=0 // pred_fallthru
    _
  // Predicated region
  $region18: #{_lstm_seq.1} parent=0 // pred_check
    _
  $region19: #{_lstm_seq.1} parent=0 // pred_check_branch
    %23 = sbr.rel (0) target = $region21
  $region20: #{_lstm_seq.1} parent=0 // pred_region
    _
  $region21: #{_lstm_seq.1} parent=0 // pred_fallthru
    _
  // Predicated region
  $region22: #{_lstm_seq.1} parent=0 // pred_check
    _
  $region23: #{_lstm_seq.1} parent=0 // pred_check_branch
    %25 = sbr.rel (0) target = $region25
  $region24: #{_lstm_seq.1} parent=0 // pred_region
    _
  $region25: #{_lstm_seq.1} parent=0 // pred_fallthru
    _
  %p27 = scmp.eq.s32.totalorder 0, 0
  // Predicated region
  $region26: #{_lstm_seq.1} parent=0 // pred_check
    %p28 = pneg %p27
  $region27: #{_lstm_seq.1} parent=0 // pred_check_branch
    %30 = sbr.rel (%p28) target = $region29
  $region28: #{_lstm_seq.1} parent=0 // pred_region
    %v31 = vld [vmem:[%s1] sm:$0xff]
    %v32 = vld [vmem:[%s1 + $0x8] sm:$0xff]
    %33 = vst [vmem:[%s7] sm:$0xff] %v31
    %34 = vst [vmem:[%s7 + $0x8] sm:$0xff] %v32
    %v35 = vld [vmem:[%s2] sm:$0xff]
    %v36 = vld [vmem:[%s2 + $0x8] sm:$0xff]
    %37 = vst [vmem:[%s8] sm:$0xff] %v35
    %38 = vst [vmem:[%s8 + $0x8] sm:$0xff] %v36
  $region29: #{_lstm_seq.1} parent=0 // pred_fallthru
    _
  %v39 = vld [vmem:[%s3] sm:$0xff]
  %v40 = vld [vmem:[%s3 + $0x8] sm:$0xff]
  %v41 = vld [vmem:[%s3 + $0x10] sm:$0xff]
  %v42 = vld [vmem:[%s3 + $0x18] sm:$0xff]
  %v43 = vld [vmem:[%s3 + $0x20] sm:$0xff]
  %v44 = vld [vmem:[%s3 + $0x28] sm:$0xff]
  %v45 = vld [vmem:[%s3 + $0x30] sm:$0xff]
  %v46 = vld [vmem:[%s3 + $0x38] sm:$0xff]
  %v47 = vld [vmem:[%s3 + $0x40] sm:$0xff]
  %v48 = vld [vmem:[%s3 + $0x48] sm:$0xff]
  %v49 = vld [vmem:[%s3 + $0x50] sm:$0xff]
  %v50 = vld [vmem:[%s3 + $0x58] sm:$0xff]
  %v51 = vld [vmem:[%s3 + $0x60] sm:$0xff]
  %v52 = vld [vmem:[%s3 + $0x68] sm:$0xff]
  %v53 = vld [vmem:[%s3 + $0x70] sm:$0xff]
  %v54 = vld [vmem:[%s3 + $0x78] sm:$0xff]
  %v55 = vld [vmem:[%s3 + $0x80] sm:$0xff]
  %v56 = vld [vmem:[%s3 + $0x88] sm:$0xff]
  %v57 = vld [vmem:[%s3 + $0x90] sm:$0xff]
  %v58 = vld [vmem:[%s3 + $0x98] sm:$0xff]
  %v59 = vld [vmem:[%s3 + $0xa0] sm:$0xff]
  %v60 = vld [vmem:[%s3 + $0xa8] sm:$0xff]
  %v61 = vld [vmem:[%s3 + $0xb0] sm:$0xff]
  %v62 = vld [vmem:[%s3 + $0xb8] sm:$0xff]
  %v63 = vld [vmem:[%s3 + $0xc0] sm:$0xff]
  %v64 = vld [vmem:[%s3 + $0xc8] sm:$0xff]
  %v65 = vld [vmem:[%s3 + $0xd0] sm:$0xff]
  %v66 = vld [vmem:[%s3 + $0xd8] sm:$0xff]
  %v67 = vld [vmem:[%s3 + $0xe0] sm:$0xff]
  %v68 = vld [vmem:[%s3 + $0xe8] sm:$0xff]
  %v69 = vld [vmem:[%s3 + $0xf0] sm:$0xff]
  %v70 = vld [vmem:[%s3 + $0xf8] sm:$0xff]
  %v71 = vld [vmem:[%s7] sm:$0xff]
  %v72 = vld [vmem:[%s7 + $0x8] sm:$0xff]
  %v73 = vld [vmem:[%s8] sm:$0xff]
  %v74 = vld [vmem:[%s8 + $0x8] sm:$0xff]
  %v75 = vld [vmem:[%s0] sm:$0xff]
  %v76 = vld [vmem:[%s0 + $0x8] sm:$0xff]
  %v77 = vld [vmem:[%s0 + $0x10] sm:$0xff]
  %v78 = vld [vmem:[%s0 + $0x18] sm:$0xff]
  %v79 = vld [vmem:[%s0 + $0x20] sm:$0xff]
  %v80 = vld [vmem:[%s0 + $0x28] sm:$0xff]
  %v81 = vld [vmem:[%s0 + $0x30] sm:$0xff]
  %v82 = vld [vmem:[%s0 + $0x38] sm:$0xff]
  %v83 = vpack.c.bf16 %v72, %v71
  %v116 = vunpack.c.l.b16 %v39
  %v117 = vunpack.c.h.b16 %v39
  %v118 = vunpack.c.l.b16 %v40
  %v119 = vunpack.c.h.b16 %v40
  %v120 = vunpack.c.l.b16 %v41
  %v121 = vunpack.c.h.b16 %v41
  %v122 = vunpack.c.l.b16 %v42
  %v123 = vunpack.c.h.b16 %v42
  %v124 = vunpack.c.l.b16 %v43
  %v125 = vunpack.c.h.b16 %v43
  %v126 = vunpack.c.l.b16 %v44
  %v127 = vunpack.c.h.b16 %v44
  %v128 = vunpack.c.l.b16 %v45
  %v129 = vunpack.c.h.b16 %v45
  %v130 = vunpack.c.l.b16 %v46
  %v131 = vunpack.c.h.b16 %v46
  %v132 = vunpack.c.l.b16 %v47
  %v133 = vunpack.c.h.b16 %v47
  %v134 = vunpack.c.l.b16 %v48
  %v135 = vunpack.c.h.b16 %v48
  %v136 = vunpack.c.l.b16 %v49
  %v137 = vunpack.c.h.b16 %v49
  %v138 = vunpack.c.l.b16 %v50
  %v139 = vunpack.c.h.b16 %v50
  %v140 = vunpack.c.l.b16 %v51
  %v141 = vunpack.c.h.b16 %v51
  %v142 = vunpack.c.l.b16 %v52
  %v143 = vunpack.c.h.b16 %v52
  %v144 = vunpack.c.l.b16 %v53
  %v145 = vunpack.c.h.b16 %v53
  %v146 = vunpack.c.l.b16 %v54
  %v147 = vunpack.c.h.b16 %v54
  %v148 = vunpack.c.l.b16 %v55
  %v149 = vunpack.c.h.b16 %v55
  %v150 = vunpack.c.l.b16 %v56
  %v151 = vunpack.c.h.b16 %v56
  %v152 = vunpack.c.l.b16 %v57
  %v153 = vunpack.c.h.b16 %v57
  %v154 = vunpack.c.l.b16 %v58
  %v155 = vunpack.c.h.b16 %v58
  %v156 = vunpack.c.l.b16 %v59
  %v157 = vunpack.c.h.b16 %v59
  %v158 = vunpack.c.l.b16 %v60
  %v159 = vunpack.c.h.b16 %v60
  %v160 = vunpack.c.l.b16 %v61
  %v161 = vunpack.c.h.b16 %v61
  %v162 = vunpack.c.l.b16 %v62
  %v163 = vunpack.c.h.b16 %v62
  %v164 = vunpack.c.l.b16 %v63
  %v165 = vunpack.c.h.b16 %v63
  %v166 = vunpack.c.l.b16 %v64
  %v167 = vunpack.c.h.b16 %v64
  %v168 = vunpack.c.l.b16 %v65
  %v169 = vunpack.c.h.b16 %v65
  %v170 = vunpack.c.l.b16 %v66
  %v171 = vunpack.c.h.b16 %v66
  %v172 = vunpack.c.l.b16 %v67
  %v173 = vunpack.c.h.b16 %v67
  %v174 = vunpack.c.l.b16 %v68
  %v175 = vunpack.c.h.b16 %v68
  %v176 = vunpack.c.l.b16 %v69
  %v177 = vunpack.c.h.b16 %v69
  %v178 = vunpack.c.l.b16 %v70
  %v179 = vunpack.c.h.b16 %v70
  %v180 = vpack.c.b16 %v120, %v116
  %v181 = vpack.c.b16 %v121, %v117
  %v182 = vpack.c.b16 %v122, %v118
  %v183 = vpack.c.b16 %v123, %v119
  %v184 = vpack.c.b16 %v128, %v124
  %v185 = vpack.c.b16 %v129, %v125
  %v186 = vpack.c.b16 %v130, %v126
  %v187 = vpack.c.b16 %v131, %v127
  %v188 = vpack.c.b16 %v136, %v132
  %v189 = vpack.c.b16 %v137, %v133
  %v190 = vpack.c.b16 %v138, %v134
  %v191 = vpack.c.b16 %v139, %v135
  %v192 = vpack.c.b16 %v144, %v140
  %v193 = vpack.c.b16 %v145, %v141
  %v194 = vpack.c.b16 %v146, %v142
  %v195 = vpack.c.b16 %v147, %v143
  %v196 = vpack.c.b16 %v152, %v148
  %v197 = vpack.c.b16 %v153, %v149
  %v198 = vpack.c.b16 %v154, %v150
  %v199 = vpack.c.b16 %v155, %v151
  %v200 = vpack.c.b16 %v160, %v156
  %v201 = vpack.c.b16 %v161, %v157
  %v202 = vpack.c.b16 %v162, %v158
  %v203 = vpack.c.b16 %v163, %v159
  %v204 = vpack.c.b16 %v168, %v164
  %v205 = vpack.c.b16 %v169, %v165
  %v206 = vpack.c.b16 %v170, %v166
  %v207 = vpack.c.b16 %v171, %v167
  %v208 = vpack.c.b16 %v176, %v172
  %v209 = vpack.c.b16 %v177, %v173
  %v210 = vpack.c.b16 %v178, %v174
  %v211 = vpack.c.b16 %v179, %v175
  %244 = vmatprep.subr.bf16.mxu0 %v181
  %245 = vmatpush1.bf16.msra.mxu0 %v180
  %246 = vmatprep.subr.bf16.mxu0 %v185
  %247 = vmatpush1.bf16.msra.mxu0 %v184
  %248 = vmatprep.subr.bf16.mxu0 %v189
  %249 = vmatpush1.bf16.msra.mxu0 %v188
  %250 = vmatprep.subr.bf16.mxu0 %v193
  %251 = vmatpush1.bf16.msra.mxu0 %v192
  %252 = vmatprep.subr.bf16.mxu0 %v197
  %253 = vmatpush1.bf16.msra.mxu0 %v196
  %254 = vmatprep.subr.bf16.mxu0 %v201
  %255 = vmatpush1.bf16.msra.mxu0 %v200
  %256 = vmatprep.subr.bf16.mxu0 %v205
  %257 = vmatpush1.bf16.msra.mxu0 %v204
  %258 = vmatprep.subr.bf16.mxu0 %v209
  %259 = vmatpush1.bf16.msra.mxu0 %v208
  %260 = vmatprep.subr.bf16.mxu0 0
  %261 = vmatpush1.bf16.msra.mxu0 0
  %262 = vmatprep.subr.bf16.mxu0 0
  %263 = vmatpush1.bf16.msra.mxu0 0
  %264 = vmatprep.subr.bf16.mxu0 0
  %265 = vmatpush1.bf16.msra.mxu0 0
  %266 = vmatprep.subr.bf16.mxu0 0
  %267 = vmatpush1.bf16.msra.mxu0 0
  %268 = vmatprep.subr.bf16.mxu0 0
  %269 = vmatpush1.bf16.msra.mxu0 0
  %270 = vmatprep.subr.bf16.mxu0 0
  %271 = vmatpush1.bf16.msra.mxu0 0
  %272 = vmatprep.subr.bf16.mxu0 0
  %273 = vmatpush1.bf16.msra.mxu0 0
  %274 = vmatprep.subr.bf16.mxu0 0
  %275 = vmatpush1.bf16.msra.mxu0 0
  %276 = vmatprep.mubr.bf16.mxu0 0
  %277 = vmatmul.mubr.bf16.gmra.mrb[0].mxu0 %v83
  %v278 = vpop.f32.mrb[0].mxu0
  %v279 = vadd.f32 0.0, %v278
  %v280 = vpop.f32.mrb[0].mxu0
  %v281 = vadd.f32 0.0, %v280
  %v282 = vpop.f32.mrb[0].mxu0
  %v283 = vadd.f32 0.0, %v282
  %v284 = vpop.f32.mrb[0].mxu0
  %v285 = vadd.f32 0.0, %v284
  %286 = vdwg.mxu0
  %287 = vmatprep.subr.bf16.mxu0 %v183
  %288 = vmatpush1.bf16.msra.mxu0 %v182
  %289 = vmatprep.subr.bf16.mxu0 %v187
  %290 = vmatpush1.bf16.msra.mxu0 %v186
  %291 = vmatprep.subr.bf16.mxu0 %v191
  %292 = vmatpush1.bf16.msra.mxu0 %v190
  %293 = vmatprep.subr.bf16.mxu0 %v195
  %294 = vmatpush1.bf16.msra.mxu0 %v194
  %295 = vmatprep.subr.bf16.mxu0 %v199
  %296 = vmatpush1.bf16.msra.mxu0 %v198
  %297 = vmatprep.subr.bf16.mxu0 %v203
  %298 = vmatpush1.bf16.msra.mxu0 %v202
  %299 = vmatprep.subr.bf16.mxu0 %v207
  %300 = vmatpush1.bf16.msra.mxu0 %v206
  %301 = vmatprep.subr.bf16.mxu0 %v211
  %302 = vmatpush1.bf16.msra.mxu0 %v210
  %303 = vmatprep.subr.bf16.mxu0 0
  %304 = vmatpush1.bf16.msra.mxu0 0
  %305 = vmatprep.subr.bf16.mxu0 0
  %306 = vmatpush1.bf16.msra.mxu0 0
  %307 = vmatprep.subr.bf16.mxu0 0
  %308 = vmatpush1.bf16.msra.mxu0 0
  %309 = vmatprep.subr.bf16.mxu0 0
  %310 = vmatpush1.bf16.msra.mxu0 0
  %311 = vmatprep.subr.bf16.mxu0 0
  %312 = vmatpush1.bf16.msra.mxu0 0
  %313 = vmatprep.subr.bf16.mxu0 0
  %314 = vmatpush1.bf16.msra.mxu0 0
  %315 = vmatprep.subr.bf16.mxu0 0
  %316 = vmatpush1.bf16.msra.mxu0 0
  %317 = vmatprep.subr.bf16.mxu0 0
  %318 = vmatpush1.bf16.msra.mxu0 0
  %319 = vmatprep.mubr.bf16.mxu0 0
  %320 = vmatmul.mubr.bf16.gmra.mrb[0].mxu0 %v83
  %v321 = vpop.f32.mrb[0].mxu0
  %v322 = vadd.f32 0.0, %v321
  %v323 = vpop.f32.mrb[0].mxu0
  %v324 = vadd.f32 0.0, %v323
  %v325 = vpop.f32.mrb[0].mxu0
  %v326 = vadd.f32 0.0, %v325
  %v327 = vpop.f32.mrb[0].mxu0
  %v328 = vadd.f32 0.0, %v327
  %329 = vdwg.mxu0
  %v330 = vadd.f32 %v75, %v279
  %v331 = vadd.f32 %v76, %v281
  %v332 = vadd.f32 %v77, %v322
  %v333 = vadd.f32 %v78, %v324
  %v334 = vadd.f32 %v79, %v283
  %v335 = vadd.f32 %v80, %v285
  %v336 = vadd.f32 %v81, %v326
  %v337 = vadd.f32 %v82, %v328
  %v338 = vxor.u32 %v330, 2147483648
  %v339 = vxor.u32 %v334, 2147483648
  %v340 = vmul.f32 %v338, 1.442695
  %v341 = vpow.pop %v340
  %v342 = vmul.f32 %v339, 1.442695
  %v343 = vpow.pop %v342
  %v344 = vadd.f32 %v341, 1.0
  %v345 = vadd.f32 %v343, 1.0
  %v346 = vrcp.pop %v344
  %v347 = vmul.f32 1.0, %v346
  %v348 = vrcp.pop %v345
  %v349 = vmul.f32 1.0, %v348
  %v350 = vxor.u32 %v331, 2147483648
  %v351 = vxor.u32 %v335, 2147483648
  %v352 = vmul.f32 %v350, 1.442695
  %v353 = vpow.pop %v352
  %v354 = vmul.f32 %v351, 1.442695
  %v355 = vpow.pop %v354
  %v356 = vadd.f32 %v353, 1.0
  %v357 = vadd.f32 %v355, 1.0
  %v358 = vrcp.pop %v356
  %v359 = vmul.f32 1.0, %v358
  %v360 = vrcp.pop %v357
  %v361 = vmul.f32 1.0, %v360
  %v362 = vtanh.pop %v332
  %v363 = vtanh.pop %v336
  %v364 = vxor.u32 %v333, 2147483648
  %v365 = vxor.u32 %v337, 2147483648
  %v366 = vmul.f32 %v364, 1.442695
  %v367 = vpow.pop %v366
  %v368 = vmul.f32 %v365, 1.442695
  %v369 = vpow.pop %v368
  %v370 = vadd.f32 %v367, 1.0
  %v371 = vadd.f32 %v369, 1.0
  %v372 = vrcp.pop %v370
  %v373 = vmul.f32 1.0, %v372
  %v374 = vrcp.pop %v371
  %v375 = vmul.f32 1.0, %v374
  %v376 = vmul.f32 %v359, %v73
  %v377 = vmul.f32 %v361, %v74
  %v378 = vmul.f32 %v347, %v362
  %v379 = vmul.f32 %v349, %v363
  %v380 = vadd.f32 %v376, %v378
  %v381 = vadd.f32 %v377, %v379
  %v382 = vtanh.pop %v380
  %v383 = vtanh.pop %v381
  %v384 = vmul.f32 %v373, %v382
  %v385 = vmul.f32 %v375, %v383
  %386 = vst [vmem:[#allocation2] sm:$0xff] %v384
  %387 = vst [vmem:[#allocation2 + $0x8] sm:$0xff] %v385
  %388 = vst [vmem:[%s7] sm:$0xff] %v384
  %389 = vst [vmem:[%s7 + $0x8] sm:$0xff] %v385
  %390 = vst [vmem:[%s8] sm:$0xff] %v380
  %391 = vst [vmem:[%s8 + $0x8] sm:$0xff] %v381
  %v392 = vld [vmem:[#allocation2] sm:$0xff]
  %v393 = vld [vmem:[#allocation2 + $0x8] sm:$0xff]
  %v394 = vpack.c.bf16 %v393, %v392
  %v395 = vld [vmem:[%s4] sm:$0xf]
  %v396 = vld [vmem:[%s4 + $0x4] sm:$0xf]
  %v397 = vld [vmem:[%s4 + $0x8] sm:$0xf]
  %v398 = vld [vmem:[%s4 + $0xc] sm:$0xf]
  %v399 = vld [vmem:[%s4 + $0x10] sm:$0xf]
  %v400 = vld [vmem:[%s4 + $0x14] sm:$0xf]
  %v401 = vld [vmem:[%s4 + $0x18] sm:$0xf]
  %v402 = vld [vmem:[%s4 + $0x1c] sm:$0xf]
  %v403 = vld [vmem:[%s4 + $0x20] sm:$0xf]
  %v404 = vld [vmem:[%s4 + $0x24] sm:$0xf]
  %v405 = vld [vmem:[%s4 + $0x28] sm:$0xf]
  %v406 = vld [vmem:[%s4 + $0x2c] sm:$0xf]
  %v407 = vld [vmem:[%s4 + $0x30] sm:$0xf]
  %v408 = vld [vmem:[%s4 + $0x34] sm:$0xf]
  %v409 = vld [vmem:[%s4 + $0x38] sm:$0xf]
  %v410 = vld [vmem:[%s4 + $0x3c] sm:$0xf]
  %v411 = vld [vmem:[%s5] sm:$0x1]
  %v413 = vlaneseq
  %v414 = vshrl.u32 %v413, 7
  %v415 = vsub.s32 0, %v414
  %v416 = vrot.slane %v411, %v415
  %v434 = vunpack.c.l.b16 %v395
  %v435 = vunpack.c.l.b16 %v396
  %v436 = vunpack.c.l.b16 %v397
  %v437 = vunpack.c.l.b16 %v398
  %v438 = vunpack.c.l.b16 %v399
  %v439 = vunpack.c.l.b16 %v400
  %v440 = vunpack.c.l.b16 %v401
  %v441 = vunpack.c.l.b16 %v402
  %v442 = vunpack.c.l.b16 %v403
  %v443 = vunpack.c.l.b16 %v404
  %v444 = vunpack.c.l.b16 %v405
  %v445 = vunpack.c.l.b16 %v406
  %v446 = vunpack.c.l.b16 %v407
  %v447 = vunpack.c.l.b16 %v408
  %v448 = vunpack.c.l.b16 %v409
  %v449 = vunpack.c.l.b16 %v410
  %v450 = vpack.c.b16 %v435, %v434
  %v451 = vpack.c.b16 %v437, %v436
  %v452 = vpack.c.b16 %v439, %v438
  %v453 = vpack.c.b16 %v441, %v440
  %v454 = vpack.c.b16 %v443, %v442
  %v455 = vpack.c.b16 %v445, %v444
  %v456 = vpack.c.b16 %v447, %v446
  %v457 = vpack.c.b16 %v449, %v448
  %466 = vmatprep.subr.bf16.mxu0 0
  %467 = vmatpush1.bf16.msra.mxu0 %v450
  %468 = vmatprep.subr.bf16.mxu0 0
  %469 = vmatpush1.bf16.msra.mxu0 %v451
  %470 = vmatprep.subr.bf16.mxu0 0
  %471 = vmatpush1.bf16.msra.mxu0 %v452
  %472 = vmatprep.subr.bf16.mxu0 0
  %473 = vmatpush1.bf16.msra.mxu0 %v453
  %474 = vmatprep.subr.bf16.mxu0 0
  %475 = vmatpush1.bf16.msra.mxu0 %v454
  %476 = vmatprep.subr.bf16.mxu0 0
  %477 = vmatpush1.bf16.msra.mxu0 %v455
  %478 = vmatprep.subr.bf16.mxu0 0
  %479 = vmatpush1.bf16.msra.mxu0 %v456
  %480 = vmatprep.subr.bf16.mxu0 0
  %481 = vmatpush1.bf16.msra.mxu0 %v457
  %482 = vmatprep.subr.bf16.mxu0 0
  %483 = vmatpush1.bf16.msra.mxu0 0
  %484 = vmatprep.subr.bf16.mxu0 0
  %485 = vmatpush1.bf16.msra.mxu0 0
  %486 = vmatprep.subr.bf16.mxu0 0
  %487 = vmatpush1.bf16.msra.mxu0 0
  %488 = vmatprep.subr.bf16.mxu0 0
  %489 = vmatpush1.bf16.msra.mxu0 0
  %490 = vmatprep.subr.bf16.mxu0 0
  %491 = vmatpush1.bf16.msra.mxu0 0
  %492 = vmatprep.subr.bf16.mxu0 0
  %493 = vmatpush1.bf16.msra.mxu0 0
  %494 = vmatprep.subr.bf16.mxu0 0
  %495 = vmatpush1.bf16.msra.mxu0 0
  %496 = vmatprep.subr.bf16.mxu0 0
  %497 = vmatpush1.bf16.msra.mxu0 0
  %498 = vmatprep.mubr.bf16.mxu0 0
  %499 = vmatmul.mubr.bf16.gmra.mrb[0].mxu0 %v394
  %v500 = vpop.f32.mrb[0].mxu0
  %v501 = vadd.f32 %v416, %v500
  %v502 = vpop.f32.mrb[0].mxu0
  %v503 = vpop.f32.mrb[0].mxu0
  %v504 = vadd.f32 %v416, %v503
  %v505 = vpop.f32.mrb[0].mxu0
  %506 = vdwg.mxu0
  %507 = vst [vmem:[%s6] sm:$0xff] %v501
  %508 = vst [vmem:[%s6 + $0x8] sm:$0xff] %v504
  // Predicated region
  $region30: #{_lstm_seq.1} parent=0 // pred_check
    _
  $region31: #{_lstm_seq.1} parent=0 // pred_check_branch
    %510 = sbr.rel (0) target = $region33
  $region32: #{_lstm_seq.1} parent=0 // pred_region
    _
  $region33: #{_lstm_seq.1} parent=0 // pred_fallthru
    _
  // Predicated region
  $region34: #{_lstm_seq.1} parent=0 // pred_check
    _
  $region35: #{_lstm_seq.1} parent=0 // pred_check_branch
    %512 = sbr.rel (0) target = $region37
  $region36: #{_lstm_seq.1} parent=0 // pred_region
    _
  $region37: #{_lstm_seq.1} parent=0 // pred_fallthru
    _
  // Predicated region
  $region38: #{_lstm_seq.1} parent=0 // pred_check
    _
  $region39: #{_lstm_seq.1} parent=0 // pred_check_branch
    %514 = sbr.rel (0) target = $region41
  $region40: #{_lstm_seq.1} parent=0 // pred_region
    _
  $region41: #{_lstm_seq.1} parent=0 // pred_fallthru
    _
  // Predicated region
  $region42: #{_lstm_seq.1} parent=0 // pred_check
    _
  $region43: #{_lstm_seq.1} parent=0 // pred_check_branch
    %516 = sbr.rel (0) target = $region45
  $region44: #{_lstm_seq.1} parent=0 // pred_region
    _
  $region45: #{_lstm_seq.1} parent=0 // pred_fallthru
    _
  // Predicated region
  $region46: #{_lstm_seq.1} parent=0 // pred_check
    _
  $region47: #{_lstm_seq.1} parent=0 // pred_check_branch
    %518 = sbr.rel (0) target = $region49
  $region48: #{_lstm_seq.1} parent=0 // pred_region
    _
  $region49: #{_lstm_seq.1} parent=0 // pred_fallthru
    _
  // Predicated region
  $region50: #{_lstm_seq.1} parent=0 // pred_check
    _
  $region51: #{_lstm_seq.1} parent=0 // pred_check_branch
    %520 = sbr.rel (0) target = $region53
  $region52: #{_lstm_seq.1} parent=0 // pred_region
    _
  $region53: #{_lstm_seq.1} parent=0 // pred_fallthru
    _

</llo_original>
